<compile_context>
chip_gen: v7x
topology: tpu7x:2x2x1
jax: 0.10.0
libtpu: 0.0.40
codegen_flags: <defaults>
</compile_context>

<pallas_src>
import jax
import jax.numpy as jnp
from jax.experimental import pallas as pl
from jax.experimental.pallas import tpu as pltpu


def _round_up(x, m):
    return ((x + m - 1) // m) * m


def _cg_path_allowed(l1, p1, l2, p2, l_out, p_out):
    """Selection rule for an SO(3) tensor-product path l1 (x) l2 -> l_out."""
    return (abs(l1 - l2) <= l_out <= l1 + l2) and (p1 * p2 == p_out)


def convert_primary_caps_params(w_s, b_s, *, out_caps, caps_dim,
                                compute_dtype=jnp.bfloat16):
    """One-time conversion of scalar_projection params into the fused layout.

    w_s: (F, out_caps * caps_dim//2)  scalar_projection weight (already (in,out);
         transpose torch's nn.Linear.weight when importing).
    b_s: (out_caps * caps_dim//2,) or (1, ...) scalar_projection bias.

    Returns {"w_fused": (F, out_caps*caps_dim) compute_dtype,
             "b_fused": (1, out_caps*caps_dim) float32}
    where column c*caps_dim + d holds w_s column c*(caps_dim//2) + d for
    d < caps_dim//2 and is zero otherwise (the torch module concatenates
    scalar_out BEFORE vector_caps along the last axis), so the kernel output
    reshapes directly to (B, out_caps, caps_dim).
    """
    # The whole vector path is elided because 'Vx1e' (x) '0e' -> 'Hx0e' has no
    # allowed instructions.  Assert that selection rule here so a silent irreps
    # change cannot make this kernel return wrong (all-zero) vector components.
    assert not _cg_path_allowed(1, 1, 0, 1, 0, 1), (
        "vector_tp irreps gained an allowed path; the vector-capsule elision "
        "in the Pallas kernel is no longer valid.")

    half = caps_dim // 2
    F = w_s.shape[0]
    out_w = out_caps * caps_dim
    assert w_s.shape == (F, out_caps * half)

    w_s32 = jnp.asarray(w_s, jnp.float32).reshape(F, out_caps, half)
    b_s32 = jnp.asarray(b_s, jnp.float32).reshape(1, out_caps, half)

    w_fused = jnp.concatenate(
        [w_s32, jnp.zeros((F, out_caps, caps_dim - half), jnp.float32)],
        axis=2).reshape(F, out_w).astype(compute_dtype)
    b_fused = jnp.concatenate(
        [b_s32, jnp.zeros((1, out_caps, caps_dim - half), jnp.float32)],
        axis=2).reshape(1, out_w)          # bias stays f32 (added post-MXU)
    return {"w_fused": w_fused, "b_fused": b_fused}


def _primary_caps_kernel(xs_ref, w_ref, b_ref, out_ref):
    # (TB, F) @ (F, out_caps*caps_dim): bf16 (or f32) MXU matmul with f32
    # accumulation, then f32 bias add.  Lane-dense output (out_w is a multiple
    # of 128 at the capsule shapes of interest) -> unmasked vst.
    acc = jnp.dot(xs_ref[...].astype(w_ref.dtype), w_ref[...],
                  preferred_element_type=jnp.float32)
    out_ref[...] = (acc + b_ref[...]).astype(out_ref.dtype)


def primary_capsule_forward(x_scalar, x_vector, fused_params, *, out_caps,
                            caps_dim, block_b=2048, out_dtype=jnp.float32):
    B, F = x_scalar.shape
    out_w = out_caps * caps_dim
    w = fused_params["w_fused"]
    b = fused_params["b_fused"]
    assert w.shape == (F, out_w) and b.shape == (1, out_w)

    # Batch tile: multiple of 8 (sublane), capped at block_b.  No padding / no
    # output slice: grid = cdiv(B, tb) and Pallas handles the ragged tail
    # (row-independent kernel; do NOT add cross-row reductions without masking).
    tb = min(block_b, _round_up(B, 8))
    if B > 8:
        # Ensure >= 2 grid steps so v7x's two TensorCores can both work the
        # "parallel" batch axis; costs one ~0.35us step on v5e/v6e (negligible).
        tb = min(tb, max(8, _round_up(pl.cdiv(B, 2), 8)))
    grid = (pl.cdiv(B, tb),)

    x_bytes = jnp.dtype(x_scalar.dtype).itemsize
    w_bytes = jnp.dtype(w.dtype).itemsize
    o_bytes = jnp.dtype(out_dtype).itemsize

    # Double-buffered activation/output tiles + resident weight/bias.
    est_vmem = (2 * tb * (F * x_bytes + out_w * o_bytes)
                + 2 * (F * out_w * w_bytes + out_w * 4))
    vmem_limit = None
    if est_vmem > 12 * 1024 * 1024:
        # Raise past v5e's 16 MiB scoped default; cap at 64 MiB (v7x physical
        # per-TC VMEM is 64 MiB — keep tb modest on v7x rather than pushing this).
        vmem_limit = min(est_vmem + (4 << 20), 64 << 20)

    cost = pl.CostEstimate(
        flops=2 * B * F * out_w,
        transcendentals=0,
        bytes_accessed=(B * F * x_bytes + F * out_w * w_bytes
                        + out_w * 4 + B * out_w * o_bytes))

    capsules_flat = pl.pallas_call(
        _primary_caps_kernel,
        out_shape=jax.ShapeDtypeStruct((B, out_w), out_dtype),
        grid_spec=pltpu.PrefetchScalarGridSpec(
            num_scalar_prefetch=0,
            grid=grid,
            in_specs=[
                pl.BlockSpec((tb, F), lambda i: (i, 0)),     # activations (tiled over B)
                pl.BlockSpec((F, out_w), lambda i: (0, 0)),  # fused weight (VMEM resident)
                pl.BlockSpec((1, out_w), lambda i: (0, 0)),  # fused bias   (VMEM resident)
            ],
            out_specs=pl.BlockSpec((tb, out_w), lambda i: (i, 0)),
        ),
        compiler_params=pltpu.CompilerParams(
            dimension_semantics=("parallel",),
            vmem_limit_bytes=vmem_limit),
        cost_estimate=cost,
    )(x_scalar, w, b)

    capsules = capsules_flat.reshape(B, out_caps, caps_dim)
    return capsules, x_vector


if __name__ == "__main__":
    B = 8
    scalar_features = 32
    vector_features = 4
    out_caps = 8
    caps_dim = 16
    half = caps_dim // 2

    key = jax.random.PRNGKey(0)
    k1, k2, k3, k4 = jax.random.split(key, 4)

    x_scalar = jax.random.normal(k1, (B, scalar_features), jnp.float32)
    x_vector = jax.random.normal(k2, (B, vector_features, 3), jnp.float32)

    # Deterministic init mirroring nn.Linear's uniform(-1/sqrt(fan_in), ...).
    bound = 1.0 / (scalar_features ** 0.5)
    w_s = jax.random.uniform(k3, (scalar_features, out_caps * half),
                             jnp.float32, -bound, bound)
    b_s = jax.random.uniform(k4, (1, out_caps * half),
                             jnp.float32, -bound, bound)
    # vector_weights / vector_tp params intentionally omitted: the tensor
    # product has zero allowed paths (asserted in convert_primary_caps_params).

    fused = convert_primary_caps_params(
        w_s, b_s, out_caps=out_caps, caps_dim=caps_dim)

    capsules, x_vec_out = primary_capsule_forward(
        x_scalar, x_vector, fused, out_caps=out_caps, caps_dim=caps_dim)
    jax.block_until_ready((capsules, x_vec_out))

    # Reference with the same bf16-input / f32-accumulate matmul semantics.
    ref_half = (jnp.dot(x_scalar.astype(jnp.bfloat16), w_s.astype(jnp.bfloat16),
                        preferred_element_type=jnp.float32) + b_s)
    ref_half = ref_half.reshape(B, out_caps, half)
    ref_caps = jnp.concatenate(
        [ref_half, jnp.zeros((B, out_caps, half), jnp.float32)], axis=2)

    assert capsules.shape == (B, out_caps, caps_dim)
    assert x_vec_out.shape == (B, vector_features, 3)
    assert jnp.allclose(capsules, ref_caps, atol=1e-3, rtol=1e-3)
    # Loose check against the exact f32 linear (only bf16 rounding differs).
    ref_f32 = (x_scalar @ w_s + b_s).reshape(B, out_caps, half)
    assert jnp.allclose(capsules[..., :half], ref_f32, atol=5e-2, rtol=5e-2)
    assert bool(jnp.all(capsules[..., half:] == 0.0))
    assert jnp.array_equal(x_vec_out, x_vector)

    print("KERNEL_OK")
</pallas_src>

<mosaic_0001>
module attributes {stable_mosaic.version = 11 : i64} {
  func.func @_primary_caps_kernel(%arg0: i32, %arg1: memref<8x32xf32, #tpu.memory_space<vmem>>, %arg2: memref<32x128xbf16, #tpu.memory_space<vmem>>, %arg3: memref<1x128xf32, #tpu.memory_space<vmem>>, %arg4: memref<8x128xf32, #tpu.memory_space<vmem>>) attributes {dimension_semantics = [#tpu.dimension_semantics<parallel>], iteration_bounds = array<i64: 1>, scalar_prefetch = 0 : i64, scratch_operands = 0 : i64, tpu.core_type = #tpu.core_type<tc>, window_params = [{transform_indices = @transform_0, window_bounds = array<i64: 8, 32>}, {pipeline_mode = #tpu.pipeline_mode<synchronous>, transform_indices = @transform_1, window_bounds = array<i64: 32, 128>}, {pipeline_mode = #tpu.pipeline_mode<synchronous>, transform_indices = @transform_2, window_bounds = array<i64: 1, 128>}, {transform_indices = @transform_3, window_bounds = array<i64: 8, 128>}]} {
    %c0 = arith.constant 0 : index
    %c0_0 = arith.constant 0 : index
    %0 = vector.load %arg1[%c0, %c0_0] : memref<8x32xf32, #tpu.memory_space<vmem>>, vector<8x32xf32>
    %1 = arith.truncf %0 : vector<8x32xf32> to vector<8x32xbf16>
    %c0_1 = arith.constant 0 : index
    %c0_2 = arith.constant 0 : index
    %2 = vector.load %arg2[%c0_1, %c0_2] : memref<32x128xbf16, #tpu.memory_space<vmem>>, vector<32x128xbf16>
    %cst = arith.constant dense<0.000000e+00> : vector<8x128xf32>
    %3 = tpu.matmul %1, %2, %cst {dimension_numbers = #tpu.dot_dimension_numbers<[1], [0], [0], [1], [0, 0, 1, 1], [], []>} : vector<8x32xbf16>, vector<32x128xbf16>, vector<8x128xf32> -> vector<8x128xf32>
    %c0_3 = arith.constant 0 : index
    %c0_4 = arith.constant 0 : index
    %4 = vector.load %arg3[%c0_3, %c0_4] : memref<1x128xf32, #tpu.memory_space<vmem>>, vector<1x128xf32>
    %5 = vector.broadcast %4 : vector<1x128xf32> to vector<8x128xf32>
    %6 = arith.addf %3, %5 : vector<8x128xf32>
    %c0_5 = arith.constant 0 : index
    %c0_6 = arith.constant 0 : index
    %7 = vector.load %arg4[%c0_5, %c0_6] : memref<8x128xf32, #tpu.memory_space<vmem>>, vector<8x128xf32>
    tpu.vector_store %arg4[%c0_5, %c0_6], %6 {strides = array<i32>} : memref<8x128xf32, #tpu.memory_space<vmem>>, vector<8x128xf32>,
    return
  }
  func.func @transform_0(%arg0: i32) -> (i32, i32) {
    %c0_i32 = arith.constant 0 : i32
    %c0_i32_0 = arith.constant 0 : i32
    return %arg0, %c0_i32 : i32, i32
  }
  func.func @transform_1(%arg0: i32) -> (i32, i32) {
    %c0_i32 = arith.constant 0 : i32
    %c0_i32_0 = arith.constant 0 : i32
    %c0_i32_1 = arith.constant 0 : i32
    return %c0_i32, %c0_i32_0 : i32, i32
  }
  func.func @transform_2(%arg0: i32) -> (i32, i32) {
    %c0_i32 = arith.constant 0 : i32
    %c0_i32_0 = arith.constant 0 : i32
    %c0_i32_1 = arith.constant 0 : i32
    return %c0_i32, %c0_i32_0 : i32, i32
  }
  func.func @transform_3(%arg0: i32) -> (i32, i32) {
    %c0_i32 = arith.constant 0 : i32
    %c0_i32_0 = arith.constant 0 : i32
    return %arg0, %c0_i32 : i32, i32
  }
}

</mosaic_0001>

<llo_original>
// kernel: tpu_custom_call.1
$region0: #{tpu_custom_call.1}
  #allocation0 [shape = 'u32[]', space=smem, size = 0x4, offset = 0x4, fixed_abs, tag = 'smem constant byte address 0x4 - core index']
  #allocation1 [shape = 'u32[144,128]{1,0:T(1,128)}', space=vmem, size = 0x12000, scoped, tag = 'internal scratch']
  %s0 = inlined_call_operand.hbm [shape: f32[8,32], index: 0, kind: input, shape index: {}]
  %s1 = inlined_call_operand.hbm [shape: bf16[32,128], index: 1, kind: input, shape index: {}]
  %s2 = inlined_call_operand.vmem [shape: f32[1,128], index: 2, kind: input, shape index: {}]
  %s3 = inlined_call_operand.hbm [shape: f32[8,128], index: 3, kind: output, shape index: {}]
  %s4 = sld [smem:[#allocation0]]
  $region30: #{tpu_custom_call.1} parent=0
    _
  %s6 = ssub.s32 1, %s4
  %s7 = scalar_select 0, %s6, %s4
  $region1: #{tpu_custom_call.1} parent=0
    #allocation2 [shape = 'u8[4096]{0}', space=vmem, size = 0x1000, scoped, tag = 'input window, operand 0, single buffered']
    #allocation3 [shape = 's32[1]{0}', space=sflag, size = 0x4, scoped, tag = 'scoped memory for tpu_custom_call.1']
    #allocation4 [shape = 's32[1]{0}', space=sflag, size = 0x4, scoped, tag = 'scoped memory for tpu_custom_call.1']
    #allocation5 [shape = 'u8[8192]{0}', space=vmem, size = 0x2000, scoped, tag = 'input window, operand 1, single buffered']
    #allocation6 [shape = 's32[1]{0}', space=sflag, size = 0x4, scoped, tag = 'scoped memory for tpu_custom_call.1']
    #allocation7 [shape = 'u8[4096]{0}', space=vmem, size = 0x1000, scoped, tag = 'output window, operand 0, single buffered']
    %8 = vsyncpa [#allocation3], 0
    %9 = vsyncpa [#allocation6], 0
    %10 = vsyncpa [#allocation4], 0
    // Predicated region
    $region2: #{tpu_custom_call.1} parent=1 // pred_check
      _
    $region3: #{tpu_custom_call.1} parent=1 // pred_check_branch
      %12 = sbr.rel (0) target = $region5
    $region4: #{tpu_custom_call.1} parent=1 // pred_region
      %s14 = ssub.s32 128, 128
      %15 = vsyncadd [#allocation3], %s14
      %s17 = sshll.u32 [#allocation2], 4
      %s18 = int_to_ptr.vmem [resolvable:$true] %s17
      %20 = dma.hbm_to_vmem [thread:$0]  %s0, 128, %s18, [#allocation3]
    $region5: #{tpu_custom_call.1} parent=1 // pred_fallthru
      _
    // Predicated region
    $region6: #{tpu_custom_call.1} parent=1 // pred_check
      _
    $region7: #{tpu_custom_call.1} parent=1 // pred_check_branch
      %22 = sbr.rel (0) target = $region9
    $region8: #{tpu_custom_call.1} parent=1 // pred_region
      %s24 = ssub.s32 256, 256
      %25 = vsyncadd [#allocation6], %s24
      %s26 = sshll.u32 [#allocation5], 4
      %s27 = int_to_ptr.vmem [resolvable:$true] %s26
      %32 = dma.hbm_to_vmem [thread:$0]  %s1, 256, %s27, [#allocation6], 64, 64, 4
    $region9: #{tpu_custom_call.1} parent=1 // pred_fallthru
      _
    // Predicated region
    $region10: #{tpu_custom_call.1} parent=1 // pred_check
      _
    $region11: #{tpu_custom_call.1} parent=1 // pred_check_branch
      %34 = sbr.rel (0) target = $region13
    $region12: #{tpu_custom_call.1} parent=1 // pred_region
      _
    $region13: #{tpu_custom_call.1} parent=1 // pred_fallthru
      _
    // Predicated region
    $region14: #{tpu_custom_call.1} parent=1 // pred_check
      _
    $region15: #{tpu_custom_call.1} parent=1 // pred_check_branch
      %36 = sbr.rel (0) target = $region17
    $region16: #{tpu_custom_call.1} parent=1 // pred_region
      %37 = dma.done [#allocation3], 128
    $region17: #{tpu_custom_call.1} parent=1 // pred_fallthru
      _
    // Predicated region
    $region18: #{tpu_custom_call.1} parent=1 // pred_check
      _
    $region19: #{tpu_custom_call.1} parent=1 // pred_check_branch
      %39 = sbr.rel (0) target = $region21
    $region20: #{tpu_custom_call.1} parent=1 // pred_region
      %40 = dma.done [#allocation6], 256
    $region21: #{tpu_custom_call.1} parent=1 // pred_fallthru
      _
    %v42 = vld [vmem:[#allocation2] sm:$0xff]
    %v43 = vpack.c.bf16 %v42, %v42
    %v44 = vld [vmem:[#allocation5] sm:$0xf]
    %v45 = vld [vmem:[#allocation5 + $0x4] sm:$0xf]
    %v46 = vld [vmem:[#allocation5 + $0x8] sm:$0xf]
    %v47 = vld [vmem:[#allocation5 + $0xc] sm:$0xf]
    %v48 = vld [vmem:[%s2] sm:$0x1]
    %v50 = vlaneseq
    %v51 = vshrl.u32 %v50, 7
    %v52 = vsub.s32 0, %v51
    %v53 = vrot.slane %v48, %v52
    %v59 = vunpack.c.l.b16 %v44
    %v60 = vunpack.c.l.b16 %v45
    %v61 = vunpack.c.l.b16 %v46
    %v62 = vunpack.c.l.b16 %v47
    %v63 = vpack.c.b16 %v60, %v59
    %v64 = vpack.c.b16 %v62, %v61
    %vm67 = vcmask 261120
    %v69 = vsel %vm67, %v43, 0
    %71 = vmatprep.subr.bf16.mxu0 0
    %72 = vmatpush1.bf16.msra.mxu0 %v63
    %73 = vmatprep.subr.bf16.mxu0 0
    %74 = vmatpush1.bf16.msra.mxu0 %v64
    %75 = vmatprep.subr.bf16.mxu0 0
    %76 = vmatpush1.bf16.msra.mxu0 0
    %77 = vmatprep.subr.bf16.mxu0 0
    %78 = vmatpush1.bf16.msra.mxu0 0
    %79 = vmatprep.subr.bf16.mxu0 0
    %80 = vmatpush1.bf16.msra.mxu0 0
    %81 = vmatprep.subr.bf16.mxu0 0
    %82 = vmatpush1.bf16.msra.mxu0 0
    %83 = vmatprep.subr.bf16.mxu0 0
    %84 = vmatpush1.bf16.msra.mxu0 0
    %85 = vmatprep.subr.bf16.mxu0 0
    %86 = vmatpush1.bf16.msra.mxu0 0
    %87 = vmatprep.subr.bf16.mxu0 0
    %88 = vmatpush1.bf16.msra.mxu0 0
    %89 = vmatprep.subr.bf16.mxu0 0
    %90 = vmatpush1.bf16.msra.mxu0 0
    %91 = vmatprep.subr.bf16.mxu0 0
    %92 = vmatpush1.bf16.msra.mxu0 0
    %93 = vmatprep.subr.bf16.mxu0 0
    %94 = vmatpush1.bf16.msra.mxu0 0
    %95 = vmatprep.subr.bf16.mxu0 0
    %96 = vmatpush1.bf16.msra.mxu0 0
    %97 = vmatprep.subr.bf16.mxu0 0
    %98 = vmatpush1.bf16.msra.mxu0 0
    %99 = vmatprep.subr.bf16.mxu0 0
    %100 = vmatpush1.bf16.msra.mxu0 0
    %101 = vmatprep.subr.bf16.mxu0 0
    %102 = vmatpush1.bf16.msra.mxu0 0
    %103 = vmatprep.mubr.bf16.mxu0 0
    %104 = vmatmul.mubr.bf16.gmra.mrb[0].mxu0 %v69
    %v105 = vpop.f32.mrb[0].mxu0
    %v106 = vadd.f32 %v53, %v105
    %v107 = vpop.f32.mrb[0].mxu0
    %v108 = vpop.f32.mrb[0].mxu0
    %v109 = vpop.f32.mrb[0].mxu0
    %110 = vdwg.mxu0
    %111 = vst [vmem:[#allocation7] sm:$0xff] %v106
    // Predicated region
    $region22: #{tpu_custom_call.1} parent=1 // pred_check
      _
    $region23: #{tpu_custom_call.1} parent=1 // pred_check_branch
      %113 = sbr.rel (0) target = $region25
    $region24: #{tpu_custom_call.1} parent=1 // pred_region
      %s115 = ssub.s32 128, 128
      %116 = vsyncadd [#allocation4], %s115
      %s118 = sshll.u32 [#allocation7], 4
      %s119 = int_to_ptr.vmem [resolvable:$true] %s118
      %121 = dma.vmem_to_hbm [thread:$0]  %s119, 128, %s3, [#allocation4]
    $region25: #{tpu_custom_call.1} parent=1 // pred_fallthru
      _
    // Predicated region
    $region26: #{tpu_custom_call.1} parent=1 // pred_check
      _
    $region27: #{tpu_custom_call.1} parent=1 // pred_check_branch
      %123 = sbr.rel (0) target = $region29
    $region28: #{tpu_custom_call.1} parent=1 // pred_region
      %124 = dma.done [#allocation4], 128
    $region29: #{tpu_custom_call.1} parent=1 // pred_fallthru
      _
    %125 = vsyncpa [#allocation3], 1
    %126 = vsyncpa [#allocation6], 1
    %127 = vsyncpa [#allocation4], 1

</llo_original>
